<compile_context>
chip_gen: v7x
topology: tpu7x:2x2x1
jax: 0.10.0
libtpu: 0.0.40
codegen_flags: <defaults>
</compile_context>

<pallas_src>
import jax
import jax.numpy as jnp
from jax import lax
from jax.experimental import pallas as pl
from jax.experimental.pallas import tpu as pltpu

MAX_NUMBER = 1000.0

# Indices into the packed parameter vector (matches nn.Parameter order).
A1, A2, A3 = 0, 1, 2
B0, B1, B2, B3 = 3, 4, 5, 6
G0, G1, G2, G3 = 7, 8, 9, 10
E1, E2, E3, E4, E5 = 11, 12, 13, 14, 15

# noc_in slab rows
NG, NS, NB, NN, NT = 0, 1, 2, 3, 4
# evt_in slab channels
SG, SSV, SB, SN, ST = 0, 1, 2, 3, 4
AG, ASV, AB, ANM, AH = 5, 6, 7, 8, 9

NOC_ROWS = 8  # Cs lives in row 0 of an 8-row (sublane-aligned) block


# ----------------------------------------------------------------------------
# Fused kernel: EMA(Cs) + EMA(Ss) + P-update/standardize + momentum + loss.
# ----------------------------------------------------------------------------
def _fused_step_kernel(params_ref, state_ref, noc_ref, evt_ref, pg_ref,
                       state_out, m_out, loss_out):
  G, E = m_out.shape

  a1 = params_ref[A1]
  a2 = params_ref[A2]
  a3 = params_ref[A3]
  b0 = params_ref[B0]
  b1 = params_ref[B1]
  b2 = params_ref[B2]
  b3 = params_ref[B3]
  g0 = params_ref[G0]
  g1 = params_ref[G1]
  g2 = params_ref[G2]
  g3 = params_ref[G3]
  e1 = params_ref[E1]
  e2 = params_ref[E2]
  e3 = params_ref[E3]
  e4 = params_ref[E4]
  e5 = params_ref[E5]

  # Load the whole state slab once (3 vregs at G=8, E=128) and slice the value.
  st = state_ref[...]                              # [NOC_ROWS + 2G, E]
  cs = st[0:1, :]                                  # [1, E]
  ss = st[NOC_ROWS:NOC_ROWS + G, :]                # [G, E]
  ps = st[NOC_ROWS + G:NOC_ROWS + 2 * G, :]        # [G, E]

  noc = noc_ref[...]                               # [8, E]
  ng = noc[NG:NG + 1, :]
  ns = noc[NS:NS + 1, :]
  nb = noc[NB:NB + 1, :]
  nn = noc[NN:NN + 1, :]
  nt = noc[NT:NT + 1, :]

  # ---- (1) update_Cs: normalize by total medals, EMA ----------------------
  # Scalar coefficients folded into the scalar reciprocals (scalar*scalar).
  w_g = b1 / jnp.sum(ng)
  w_s = b2 / jnp.sum(ns)
  w_b = b3 / jnp.sum(nb)
  c_inc = (w_g * ng + w_s * ns + w_b * nb) * pl.reciprocal(
      1.0 + b0 * nn, approx=True)
  alpha_c = 2.0 * pl.reciprocal(nt + 1.0, approx=True)
  cs_new = cs + alpha_c * (c_inc - cs)             # = a*inc + (1-a)*cs

  # ---- (2) update_Ss: per-sport (row) medal totals, EMA --------------------
  sg = evt_ref[SG]
  ssv = evt_ref[SSV]
  sb = evt_ref[SB]
  sn = evt_ref[SN]
  stt = evt_ref[ST]
  # Fold gamma1..3 into the [G,1] reciprocal columns before broadcasting.
  wg = g1 * pl.reciprocal(jnp.sum(sg, axis=-1, keepdims=True), approx=True)
  ws = g2 * pl.reciprocal(jnp.sum(ssv, axis=-1, keepdims=True), approx=True)
  wb = g3 * pl.reciprocal(jnp.sum(sb, axis=-1, keepdims=True), approx=True)
  s_inc = (wg * sg + ws * ssv + wb * sb) * pl.reciprocal(
      1.0 + g0 * sn, approx=True)
  alpha_s = 2.0 * pl.reciprocal(stt + 1.0, approx=True)
  ss_new = ss + alpha_s * (s_inc - ss)

  # ---- (3) update_Ps: personal momentum + per-sport standardization -------
  p_new = (ps + e1 * evt_ref[AG] + e2 * evt_ref[ASV] + e3 * evt_ref[AB]
           + e4 * evt_ref[ANM] + e5 * evt_ref[AH])
  mu = jnp.mean(p_new, axis=-1, keepdims=True)
  d = p_new - mu
  var = jnp.sum(d * d, axis=-1, keepdims=True) * (1.0 / (E - 1))  # ddof=1
  ps_new = d * lax.rsqrt(var)                      # EUP rsqrt

  # ---- (4) momentum M = exp(a1*C + a2*S + a3*P), NaN/>max -> max ----------
  m = jnp.exp(a1 * cs_new + a2 * ss_new + a3 * ps_new)   # [1,E] broadcast in-kernel
  bad = jnp.isnan(m) | (m > MAX_NUMBER)
  m_out[...] = jnp.where(bad, jnp.float32(MAX_NUMBER), m)

  # ---- state writeback: one full, unmasked, lane-dense store ---------------
  # (padding rows of the NOC block carry copies of cs_new; only row 0 is read)
  state_out[...] = jnp.concatenate(
      [jnp.broadcast_to(cs_new, (NOC_ROWS, E)), ss_new, ps_new], axis=0)

  # ---- (5) cal_loss -------------------------------------------------------
  pg = pg_ref[...]                                 # [6, N]
  pred = pg[0:3, :]
  gd = pg[3:6, :]
  diff = pred - gd
  per_medal = jnp.sum(diff * diff)
  tot = jnp.sum(diff, axis=0)                      # sum(pred,0) - sum(gd,0)
  per_total = jnp.sum(tot * tot)
  loss_out[0] = (per_medal + per_total) * (1.0 / pg.shape[-1])


def _full_spec(shape):
  nd = len(shape)
  return pl.BlockSpec(shape, lambda i, _nd=nd: (0,) * _nd)


def _fused_step(params, state, noc_in, evt_in, predgd):
  """One fused forward step on packed slabs -> (state_new, M, loss)."""
  _, G, E = evt_in.shape
  rows = state.shape[0]
  n_noc = predgd.shape[1]
  assert rows == NOC_ROWS + 2 * G and G % 8 == 0 and E % 128 == 0

  smem = pl.BlockSpec(memory_space=pltpu.MemorySpace.SMEM)
  out_shapes = (
      jax.ShapeDtypeStruct((rows, E), jnp.float32),   # state_new (aliased)
      jax.ShapeDtypeStruct((G, E), jnp.float32),      # M
      jax.ShapeDtypeStruct((1,), jnp.float32),        # loss
  )
  return pl.pallas_call(
      _fused_step_kernel,
      out_shape=out_shapes,
      grid=(1,),
      in_specs=[smem,
                _full_spec((rows, E)),
                _full_spec((NOC_ROWS, E)),
                _full_spec((10, G, E)),
                _full_spec((6, n_noc))],
      out_specs=(_full_spec((rows, E)), _full_spec((G, E)), smem),
      input_output_aliases={1: 0},   # state slab updated in place
      compiler_params=pltpu.CompilerParams(
          dimension_semantics=("arbitrary",)),
  )(params, state, noc_in, evt_in, predgd)


fused_step = jax.jit(_fused_step)


def make_params():
  return jnp.array(
      [2.0, 5.0, 2.0,               # a1, a2, a3
       0.2, 2.0, 2.0, 2.0,          # beta0..beta3
       0.2, 2.0, 2.0, 2.0,          # gamma0..gamma3
       0.3, 0.3, 0.3, -0.2, 0.8],   # eta1..eta5
      dtype=jnp.float32)


# ----------------------------------------------------------------------------
# Driver: deterministic synthetic data, one fused step, pure-JAX reference.
# ----------------------------------------------------------------------------
if __name__ == "__main__":
  key = jax.random.PRNGKey(0)
  G_SPORTS, E_ENT = 8, 128          # sports x (NOCs / athletes), lane-aligned

  params = make_params()
  ks = jax.random.split(key, 16)

  # ---- NOC-level state (update_Cs) -----------------------------------------
  cs = jnp.ones((1, E_ENT), jnp.float32)
  noc_g = jax.random.uniform(ks[0], (1, E_ENT)) * 5.0
  noc_s = jax.random.uniform(ks[1], (1, E_ENT)) * 5.0
  noc_b = jax.random.uniform(ks[2], (1, E_ENT)) * 5.0
  noc_n = jnp.floor(jax.random.uniform(ks[3], (1, E_ENT)) * 20.0) + 1.0
  noc_t = jnp.ones((1, E_ENT), jnp.float32)

  # ---- sport-level state (update_Ss) ----------------------------------------
  ss = jnp.ones((G_SPORTS, E_ENT), jnp.float32)
  sp_g = jax.random.uniform(ks[4], (G_SPORTS, E_ENT)) * 3.0
  sp_s = jax.random.uniform(ks[5], (G_SPORTS, E_ENT)) * 3.0
  sp_b = jax.random.uniform(ks[6], (G_SPORTS, E_ENT)) * 3.0
  sp_n = jnp.floor(jax.random.uniform(ks[7], (G_SPORTS, E_ENT)) * 10.0) + 1.0
  sp_t = jnp.ones((G_SPORTS, E_ENT), jnp.float32)

  # ---- personal state (update_Ps) -------------------------------------------
  ps = jnp.zeros((G_SPORTS, E_ENT), jnp.float32)
  a_g = (jax.random.uniform(ks[8], (G_SPORTS, E_ENT)) < 0.1).astype(jnp.float32)
  a_s = (jax.random.uniform(ks[9], (G_SPORTS, E_ENT)) < 0.1).astype(jnp.float32)
  a_b = (jax.random.uniform(ks[10], (G_SPORTS, E_ENT)) < 0.1).astype(jnp.float32)
  a_nm = (jax.random.uniform(ks[11], (G_SPORTS, E_ENT)) < 0.5).astype(jnp.float32)
  a_host = (jax.random.uniform(ks[12], (G_SPORTS, E_ENT)) < 0.05).astype(jnp.float32)

  # ---- loss inputs (cal_loss) ------------------------------------------------
  pred = jax.random.uniform(ks[13], (3, E_ENT)) * 4.0
  gd = jax.random.uniform(ks[14], (3, E_ENT)) * 4.0

  # ---- pack into lane-dense slabs -------------------------------------------
  state = jnp.concatenate(
      [jnp.broadcast_to(cs, (NOC_ROWS, E_ENT)), ss, ps], axis=0)       # [24, E]
  noc_in = jnp.concatenate(
      [noc_g, noc_s, noc_b, noc_n, noc_t,
       jnp.zeros((NOC_ROWS - 5, E_ENT), jnp.float32)], axis=0)         # [8, E]
  evt_in = jnp.stack(
      [sp_g, sp_s, sp_b, sp_n, sp_t,
       a_g, a_s, a_b, a_nm, a_host], axis=0)                           # [10,G,E]
  predgd = jnp.concatenate([pred, gd], axis=0)                         # [6, E]

  # ---- single fused kernel call ---------------------------------------------
  state_new, m, loss = jax.block_until_ready(
      fused_step(params, state, noc_in, evt_in, predgd))

  cs_new = state_new[0:1, :]
  ss_new = state_new[NOC_ROWS:NOC_ROWS + G_SPORTS, :]
  ps_new = state_new[NOC_ROWS + G_SPORTS:NOC_ROWS + 2 * G_SPORTS, :]

  # ---- pure-JAX reference checks (exact math; kernel uses approx recips) ----
  def ref_ema(st0, g, s, b, n, t, c0, c1, c2, c3):
    inc = (c1 * g + c2 * s + c3 * b) / (1.0 + c0 * n)
    alpha = 2.0 / (t + 1.0)
    return alpha * inc + (1.0 - alpha) * st0

  cs_ref = ref_ema(cs, noc_g / noc_g.sum(), noc_s / noc_s.sum(),
                   noc_b / noc_b.sum(), noc_n, noc_t, 0.2, 2.0, 2.0, 2.0)

  ss_ref = ref_ema(ss,
                   sp_g / sp_g.sum(axis=-1, keepdims=True),
                   sp_s / sp_s.sum(axis=-1, keepdims=True),
                   sp_b / sp_b.sum(axis=-1, keepdims=True),
                   sp_n, sp_t, 0.2, 2.0, 2.0, 2.0)

  p_raw = ps + 0.3 * a_g + 0.3 * a_s + 0.3 * a_b - 0.2 * a_nm + 0.8 * a_host
  mu = p_raw.mean(axis=-1, keepdims=True)
  std = jnp.sqrt(((p_raw - mu) ** 2).sum(axis=-1, keepdims=True) / (E_ENT - 1))
  ps_ref = (p_raw - mu) / std

  # Momentum check driven from the kernel-produced state (stage-local check).
  m_ref = jnp.exp(2.0 * jnp.broadcast_to(cs_new, (G_SPORTS, E_ENT))
                  + 5.0 * ss_new + 2.0 * ps_new)
  m_ref = jnp.where(jnp.isnan(m_ref) | (m_ref > MAX_NUMBER), MAX_NUMBER, m_ref)

  diff = pred - gd
  loss_ref = (jnp.sum(diff ** 2)
              + jnp.sum((pred.sum(0) - gd.sum(0)) ** 2)) / E_ENT

  # Tolerances loosened vs. the exact reference because the kernel uses
  # pl.reciprocal(approx=True) for the per-lane divides (EUP path).
  assert jnp.allclose(cs_new, cs_ref, rtol=5e-3, atol=5e-3)
  assert jnp.allclose(ss_new, ss_ref, rtol=5e-3, atol=5e-3)
  assert jnp.allclose(ps_new, ps_ref, rtol=5e-3, atol=5e-3)
  assert jnp.allclose(m, m_ref, rtol=2e-3, atol=5e-2)
  assert jnp.allclose(loss[0], loss_ref, rtol=1e-3, atol=1e-3)

  print("KERNEL_OK")
</pallas_src>

<mosaic_0001>
module attributes {stable_mosaic.version = 11 : i64} {
  func.func @_fused_step_kernel(%arg0: i32, %arg1: memref<16xf32, #tpu.memory_space<smem>>, %arg2: memref<24x128xf32, #tpu.memory_space<vmem>>, %arg3: memref<8x128xf32, #tpu.memory_space<vmem>>, %arg4: memref<10x8x128xf32, #tpu.memory_space<vmem>>, %arg5: memref<6x128xf32, #tpu.memory_space<vmem>>, %arg6: memref<24x128xf32, #tpu.memory_space<vmem>>, %arg7: memref<8x128xf32, #tpu.memory_space<vmem>>, %arg8: memref<1xf32, #tpu.memory_space<smem>>) attributes {dimension_semantics = [#tpu.dimension_semantics<arbitrary>], iteration_bounds = array<i64: 1>, scalar_prefetch = 0 : i64, scratch_operands = 0 : i64, tpu.core_type = #tpu.core_type<tc>, window_params = [{transform_indices = @transform_0, window_bounds = array<i64: 16>}, {pipeline_mode = #tpu.pipeline_mode<synchronous>, transform_indices = @transform_1, window_bounds = array<i64: 24, 128>}, {pipeline_mode = #tpu.pipeline_mode<synchronous>, transform_indices = @transform_2, window_bounds = array<i64: 8, 128>}, {pipeline_mode = #tpu.pipeline_mode<synchronous>, transform_indices = @transform_3, window_bounds = array<i64: 10, 8, 128>}, {pipeline_mode = #tpu.pipeline_mode<synchronous>, transform_indices = @transform_4, window_bounds = array<i64: 6, 128>}, {pipeline_mode = #tpu.pipeline_mode<synchronous>, transform_indices = @transform_5, window_bounds = array<i64: 24, 128>}, {pipeline_mode = #tpu.pipeline_mode<synchronous>, transform_indices = @transform_6, window_bounds = array<i64: 8, 128>}, {transform_indices = @transform_7, window_bounds = array<i64: 1>}]} {
    %c0 = arith.constant 0 : index
    %0 = memref.load %arg1[%c0] : memref<16xf32, #tpu.memory_space<smem>>
    %c1 = arith.constant 1 : index
    %1 = memref.load %arg1[%c1] : memref<16xf32, #tpu.memory_space<smem>>
    %c2 = arith.constant 2 : index
    %2 = memref.load %arg1[%c2] : memref<16xf32, #tpu.memory_space<smem>>
    %c3 = arith.constant 3 : index
    %3 = memref.load %arg1[%c3] : memref<16xf32, #tpu.memory_space<smem>>
    %c4 = arith.constant 4 : index
    %4 = memref.load %arg1[%c4] : memref<16xf32, #tpu.memory_space<smem>>
    %c5 = arith.constant 5 : index
    %5 = memref.load %arg1[%c5] : memref<16xf32, #tpu.memory_space<smem>>
    %c6 = arith.constant 6 : index
    %6 = memref.load %arg1[%c6] : memref<16xf32, #tpu.memory_space<smem>>
    %c7 = arith.constant 7 : index
    %7 = memref.load %arg1[%c7] : memref<16xf32, #tpu.memory_space<smem>>
    %c8 = arith.constant 8 : index
    %8 = memref.load %arg1[%c8] : memref<16xf32, #tpu.memory_space<smem>>
    %c9 = arith.constant 9 : index
    %9 = memref.load %arg1[%c9] : memref<16xf32, #tpu.memory_space<smem>>
    %c10 = arith.constant 10 : index
    %10 = memref.load %arg1[%c10] : memref<16xf32, #tpu.memory_space<smem>>
    %c11 = arith.constant 11 : index
    %11 = memref.load %arg1[%c11] : memref<16xf32, #tpu.memory_space<smem>>
    %c12 = arith.constant 12 : index
    %12 = memref.load %arg1[%c12] : memref<16xf32, #tpu.memory_space<smem>>
    %c13 = arith.constant 13 : index
    %13 = memref.load %arg1[%c13] : memref<16xf32, #tpu.memory_space<smem>>
    %c14 = arith.constant 14 : index
    %14 = memref.load %arg1[%c14] : memref<16xf32, #tpu.memory_space<smem>>
    %c15 = arith.constant 15 : index
    %15 = memref.load %arg1[%c15] : memref<16xf32, #tpu.memory_space<smem>>
    %c0_0 = arith.constant 0 : index
    %c0_1 = arith.constant 0 : index
    %16 = vector.load %arg2[%c0_0, %c0_1] : memref<24x128xf32, #tpu.memory_space<vmem>>, vector<24x128xf32>
    %17 = vector.extract_strided_slice %16 {offsets = [0, 0], sizes = [1, 128], strides = [1, 1]} : vector<24x128xf32> to vector<1x128xf32>
    %18 = vector.extract_strided_slice %16 {offsets = [8, 0], sizes = [8, 128], strides = [1, 1]} : vector<24x128xf32> to vector<8x128xf32>
    %19 = vector.extract_strided_slice %16 {offsets = [16, 0], sizes = [8, 128], strides = [1, 1]} : vector<24x128xf32> to vector<8x128xf32>
    %c0_2 = arith.constant 0 : index
    %c0_3 = arith.constant 0 : index
    %20 = vector.load %arg3[%c0_2, %c0_3] : memref<8x128xf32, #tpu.memory_space<vmem>>, vector<8x128xf32>
    %21 = vector.extract_strided_slice %20 {offsets = [0, 0], sizes = [1, 128], strides = [1, 1]} : vector<8x128xf32> to vector<1x128xf32>
    %22 = vector.extract_strided_slice %20 {offsets = [1, 0], sizes = [1, 128], strides = [1, 1]} : vector<8x128xf32> to vector<1x128xf32>
    %23 = vector.extract_strided_slice %20 {offsets = [2, 0], sizes = [1, 128], strides = [1, 1]} : vector<8x128xf32> to vector<1x128xf32>
    %24 = vector.extract_strided_slice %20 {offsets = [3, 0], sizes = [1, 128], strides = [1, 1]} : vector<8x128xf32> to vector<1x128xf32>
    %25 = vector.extract_strided_slice %20 {offsets = [4, 0], sizes = [1, 128], strides = [1, 1]} : vector<8x128xf32> to vector<1x128xf32>
    %26 = vector.shape_cast %21 : vector<1x128xf32> to vector<1x1x128xf32>
    %cst = arith.constant dense<0.000000e+00> : vector<1xf32>
    %27 = vector.multi_reduction <add>, %26, %cst [1, 2] : vector<1x1x128xf32> to vector<1xf32>
    %28 = vector.shape_cast %27 : vector<1xf32> to vector<1x1x1xf32>
    %29 = vector.extract %28[0, 0, 0] : f32 from vector<1x1x1xf32>
    %30 = arith.divf %4, %29 : f32
    %31 = vector.shape_cast %22 : vector<1x128xf32> to vector<1x1x128xf32>
    %cst_4 = arith.constant dense<0.000000e+00> : vector<1xf32>
    %32 = vector.multi_reduction <add>, %31, %cst_4 [1, 2] : vector<1x1x128xf32> to vector<1xf32>
    %33 = vector.shape_cast %32 : vector<1xf32> to vector<1x1x1xf32>
    %34 = vector.extract %33[0, 0, 0] : f32 from vector<1x1x1xf32>
    %35 = arith.divf %5, %34 : f32
    %36 = vector.shape_cast %23 : vector<1x128xf32> to vector<1x1x128xf32>
    %cst_5 = arith.constant dense<0.000000e+00> : vector<1xf32>
    %37 = vector.multi_reduction <add>, %36, %cst_5 [1, 2] : vector<1x1x128xf32> to vector<1xf32>
    %38 = vector.shape_cast %37 : vector<1xf32> to vector<1x1x1xf32>
    %39 = vector.extract %38[0, 0, 0] : f32 from vector<1x1x1xf32>
    %40 = arith.divf %6, %39 : f32
    %41 = vector.broadcast %30 : f32 to vector<1x128xf32>
    %42 = arith.mulf %41, %21 : vector<1x128xf32>
    %43 = vector.broadcast %35 : f32 to vector<1x128xf32>
    %44 = arith.mulf %43, %22 : vector<1x128xf32>
    %45 = arith.addf %42, %44 : vector<1x128xf32>
    %46 = vector.broadcast %40 : f32 to vector<1x128xf32>
    %47 = arith.mulf %46, %23 : vector<1x128xf32>
    %48 = arith.addf %45, %47 : vector<1x128xf32>
    %49 = vector.broadcast %3 : f32 to vector<1x128xf32>
    %50 = arith.mulf %49, %24 : vector<1x128xf32>
    %cst_6 = arith.constant 1.000000e+00 : f32
    %51 = vector.broadcast %cst_6 : f32 to vector<1x128xf32>
    %52 = arith.addf %51, %50 : vector<1x128xf32>
    %53 = tpu.reciprocal %52 {approx = true} : vector<1x128xf32> -> vector<1x128xf32>
    %54 = arith.mulf %48, %53 : vector<1x128xf32>
    %cst_7 = arith.constant 1.000000e+00 : f32
    %55 = vector.broadcast %cst_7 : f32 to vector<1x128xf32>
    %56 = arith.addf %25, %55 : vector<1x128xf32>
    %57 = tpu.reciprocal %56 {approx = true} : vector<1x128xf32> -> vector<1x128xf32>
    %cst_8 = arith.constant 2.000000e+00 : f32
    %58 = vector.broadcast %cst_8 : f32 to vector<1x128xf32>
    %59 = arith.mulf %58, %57 : vector<1x128xf32>
    %60 = arith.subf %54, %17 : vector<1x128xf32>
    %61 = arith.mulf %59, %60 : vector<1x128xf32>
    %62 = arith.addf %17, %61 : vector<1x128xf32>
    %c0_9 = arith.constant 0 : index
    %c0_10 = arith.constant 0 : index
    %c0_11 = arith.constant 0 : index
    %63 = vector.load %arg4[%c0_9, %c0_10, %c0_11] : memref<10x8x128xf32, #tpu.memory_space<vmem>>, vector<1x8x128xf32>
    %64 = vector.shape_cast %63 : vector<1x8x128xf32> to vector<8x128xf32>
    %c1_12 = arith.constant 1 : index
    %c0_13 = arith.constant 0 : index
    %c0_14 = arith.constant 0 : index
    %65 = vector.load %arg4[%c1_12, %c0_13, %c0_14] : memref<10x8x128xf32, #tpu.memory_space<vmem>>, vector<1x8x128xf32>
    %66 = vector.shape_cast %65 : vector<1x8x128xf32> to vector<8x128xf32>
    %c2_15 = arith.constant 2 : index
    %c0_16 = arith.constant 0 : index
    %c0_17 = arith.constant 0 : index
    %67 = vector.load %arg4[%c2_15, %c0_16, %c0_17] : memref<10x8x128xf32, #tpu.memory_space<vmem>>, vector<1x8x128xf32>
    %68 = vector.shape_cast %67 : vector<1x8x128xf32> to vector<8x128xf32>
    %c3_18 = arith.constant 3 : index
    %c0_19 = arith.constant 0 : index
    %c0_20 = arith.constant 0 : index
    %69 = vector.load %arg4[%c3_18, %c0_19, %c0_20] : memref<10x8x128xf32, #tpu.memory_space<vmem>>, vector<1x8x128xf32>
    %70 = vector.shape_cast %69 : vector<1x8x128xf32> to vector<8x128xf32>
    %c4_21 = arith.constant 4 : index
    %c0_22 = arith.constant 0 : index
    %c0_23 = arith.constant 0 : index
    %71 = vector.load %arg4[%c4_21, %c0_22, %c0_23] : memref<10x8x128xf32, #tpu.memory_space<vmem>>, vector<1x8x128xf32>
    %72 = vector.shape_cast %71 : vector<1x8x128xf32> to vector<8x128xf32>
    %cst_24 = arith.constant dense<0.000000e+00> : vector<8xf32>
    %73 = vector.multi_reduction <add>, %64, %cst_24 [1] : vector<8x128xf32> to vector<8xf32>
    %74 = vector.shape_cast %73 : vector<8xf32> to vector<8x1xf32>
    %75 = tpu.reciprocal %74 {approx = true} : vector<8x1xf32> -> vector<8x1xf32>
    %76 = vector.broadcast %8 : f32 to vector<8x1xf32>
    %77 = arith.mulf %76, %75 : vector<8x1xf32>
    %cst_25 = arith.constant dense<0.000000e+00> : vector<8xf32>
    %78 = vector.multi_reduction <add>, %66, %cst_25 [1] : vector<8x128xf32> to vector<8xf32>
    %79 = vector.shape_cast %78 : vector<8xf32> to vector<8x1xf32>
    %80 = tpu.reciprocal %79 {approx = true} : vector<8x1xf32> -> vector<8x1xf32>
    %81 = vector.broadcast %9 : f32 to vector<8x1xf32>
    %82 = arith.mulf %81, %80 : vector<8x1xf32>
    %cst_26 = arith.constant dense<0.000000e+00> : vector<8xf32>
    %83 = vector.multi_reduction <add>, %68, %cst_26 [1] : vector<8x128xf32> to vector<8xf32>
    %84 = vector.shape_cast %83 : vector<8xf32> to vector<8x1xf32>
    %85 = tpu.reciprocal %84 {approx = true} : vector<8x1xf32> -> vector<8x1xf32>
    %86 = vector.broadcast %10 : f32 to vector<8x1xf32>
    %87 = arith.mulf %86, %85 : vector<8x1xf32>
    %88 = vector.broadcast %77 : vector<8x1xf32> to vector<8x128xf32>
    %89 = arith.mulf %88, %64 : vector<8x128xf32>
    %90 = vector.broadcast %82 : vector<8x1xf32> to vector<8x128xf32>
    %91 = arith.mulf %90, %66 : vector<8x128xf32>
    %92 = arith.addf %89, %91 : vector<8x128xf32>
    %93 = vector.broadcast %87 : vector<8x1xf32> to vector<8x128xf32>
    %94 = arith.mulf %93, %68 : vector<8x128xf32>
    %95 = arith.addf %92, %94 : vector<8x128xf32>
    %96 = vector.broadcast %7 : f32 to vector<8x128xf32>
    %97 = arith.mulf %96, %70 : vector<8x128xf32>
    %cst_27 = arith.constant 1.000000e+00 : f32
    %98 = vector.broadcast %cst_27 : f32 to vector<8x128xf32>
    %99 = arith.addf %98, %97 : vector<8x128xf32>
    %100 = tpu.reciprocal %99 {approx = true} : vector<8x128xf32> -> vector<8x128xf32>
    %101 = arith.mulf %95, %100 : vector<8x128xf32>
    %cst_28 = arith.constant 1.000000e+00 : f32
    %102 = vector.broadcast %cst_28 : f32 to vector<8x128xf32>
    %103 = arith.addf %72, %102 : vector<8x128xf32>
    %104 = tpu.reciprocal %103 {approx = true} : vector<8x128xf32> -> vector<8x128xf32>
    %cst_29 = arith.constant 2.000000e+00 : f32
    %105 = vector.broadcast %cst_29 : f32 to vector<8x128xf32>
    %106 = arith.mulf %105, %104 : vector<8x128xf32>
    %107 = arith.subf %101, %18 : vector<8x128xf32>
    %108 = arith.mulf %106, %107 : vector<8x128xf32>
    %109 = arith.addf %18, %108 : vector<8x128xf32>
    %c5_30 = arith.constant 5 : index
    %c0_31 = arith.constant 0 : index
    %c0_32 = arith.constant 0 : index
    %110 = vector.load %arg4[%c5_30, %c0_31, %c0_32] : memref<10x8x128xf32, #tpu.memory_space<vmem>>, vector<1x8x128xf32>
    %111 = vector.shape_cast %110 : vector<1x8x128xf32> to vector<8x128xf32>
    %112 = vector.broadcast %11 : f32 to vector<8x128xf32>
    %113 = arith.mulf %112, %111 : vector<8x128xf32>
    %114 = arith.addf %19, %113 : vector<8x128xf32>
    %c6_33 = arith.constant 6 : index
    %c0_34 = arith.constant 0 : index
    %c0_35 = arith.constant 0 : index
    %115 = vector.load %arg4[%c6_33, %c0_34, %c0_35] : memref<10x8x128xf32, #tpu.memory_space<vmem>>, vector<1x8x128xf32>
    %116 = vector.shape_cast %115 : vector<1x8x128xf32> to vector<8x128xf32>
    %117 = vector.broadcast %12 : f32 to vector<8x128xf32>
    %118 = arith.mulf %117, %116 : vector<8x128xf32>
    %119 = arith.addf %114, %118 : vector<8x128xf32>
    %c7_36 = arith.constant 7 : index
    %c0_37 = arith.constant 0 : index
    %c0_38 = arith.constant 0 : index
    %120 = vector.load %arg4[%c7_36, %c0_37, %c0_38] : memref<10x8x128xf32, #tpu.memory_space<vmem>>, vector<1x8x128xf32>
    %121 = vector.shape_cast %120 : vector<1x8x128xf32> to vector<8x128xf32>
    %122 = vector.broadcast %13 : f32 to vector<8x128xf32>
    %123 = arith.mulf %122, %121 : vector<8x128xf32>
    %124 = arith.addf %119, %123 : vector<8x128xf32>
    %c8_39 = arith.constant 8 : index
    %c0_40 = arith.constant 0 : index
    %c0_41 = arith.constant 0 : index
    %125 = vector.load %arg4[%c8_39, %c0_40, %c0_41] : memref<10x8x128xf32, #tpu.memory_space<vmem>>, vector<1x8x128xf32>
    %126 = vector.shape_cast %125 : vector<1x8x128xf32> to vector<8x128xf32>
    %127 = vector.broadcast %14 : f32 to vector<8x128xf32>
    %128 = arith.mulf %127, %126 : vector<8x128xf32>
    %129 = arith.addf %124, %128 : vector<8x128xf32>
    %c9_42 = arith.constant 9 : index
    %c0_43 = arith.constant 0 : index
    %c0_44 = arith.constant 0 : index
    %130 = vector.load %arg4[%c9_42, %c0_43, %c0_44] : memref<10x8x128xf32, #tpu.memory_space<vmem>>, vector<1x8x128xf32>
    %131 = vector.shape_cast %130 : vector<1x8x128xf32> to vector<8x128xf32>
    %132 = vector.broadcast %15 : f32 to vector<8x128xf32>
    %133 = arith.mulf %132, %131 : vector<8x128xf32>
    %134 = arith.addf %129, %133 : vector<8x128xf32>
    %cst_45 = arith.constant dense<0.000000e+00> : vector<8xf32>
    %135 = vector.multi_reduction <add>, %134, %cst_45 [1] : vector<8x128xf32> to vector<8xf32>
    %136 = vector.shape_cast %135 : vector<8xf32> to vector<8x1xf32>
    %cst_46 = arith.constant 1.280000e+02 : f32
    %137 = vector.broadcast %cst_46 : f32 to vector<8x1xf32>
    %138 = arith.divf %136, %137 : vector<8x1xf32>
    %139 = vector.broadcast %138 : vector<8x1xf32> to vector<8x128xf32>
    %140 = arith.subf %134, %139 : vector<8x128xf32>
    %141 = arith.mulf %140, %140 : vector<8x128xf32>
    %cst_47 = arith.constant dense<0.000000e+00> : vector<8xf32>
    %142 = vector.multi_reduction <add>, %141, %cst_47 [1] : vector<8x128xf32> to vector<8xf32>
    %143 = vector.shape_cast %142 : vector<8xf32> to vector<8x1xf32>
    %cst_48 = arith.constant 0.00787401571 : f32
    %144 = vector.broadcast %cst_48 : f32 to vector<8x1xf32>
    %145 = arith.mulf %143, %144 : vector<8x1xf32>
    %146 = math.rsqrt %145 : vector<8x1xf32>
    %147 = vector.broadcast %146 : vector<8x1xf32> to vector<8x128xf32>
    %148 = arith.mulf %140, %147 : vector<8x128xf32>
    %149 = vector.broadcast %0 : f32 to vector<1x128xf32>
    %150 = arith.mulf %149, %62 : vector<1x128xf32>
    %151 = vector.broadcast %1 : f32 to vector<8x128xf32>
    %152 = arith.mulf %151, %109 : vector<8x128xf32>
    %153 = vector.broadcast %150 : vector<1x128xf32> to vector<8x128xf32>
    %154 = arith.addf %153, %152 : vector<8x128xf32>
    %155 = vector.broadcast %2 : f32 to vector<8x128xf32>
    %156 = arith.mulf %155, %148 : vector<8x128xf32>
    %157 = arith.addf %154, %156 : vector<8x128xf32>
    %158 = math.exp %157 : vector<8x128xf32>
    %159 = arith.cmpf one, %158, %158 : vector<8x128xf32>
    %cst_49 = arith.constant 1.000000e+03 : f32
    %160 = vector.broadcast %cst_49 : f32 to vector<8x128xf32>
    %161 = arith.cmpf ogt, %158, %160 : vector<8x128xf32>
    %162 = arith.ori %159, %161 : vector<8x128xi1>
    %cst_50 = arith.constant 1.000000e+03 : f32
    %163 = vector.broadcast %cst_50 : f32 to vector<8x128xf32>
    %164 = arith.select %162, %163, %158 : vector<8x128xi1>, vector<8x128xf32>
    %c0_51 = arith.constant 0 : index
    %c0_52 = arith.constant 0 : index
    %165 = vector.load %arg7[%c0_51, %c0_52] : memref<8x128xf32, #tpu.memory_space<vmem>>, vector<8x128xf32>
    tpu.vector_store %arg7[%c0_51, %c0_52], %164 {strides = array<i32>} : memref<8x128xf32, #tpu.memory_space<vmem>>, vector<8x128xf32>,
    %166 = vector.shape_cast %62 : vector<1x128xf32> to vector<1x128xf32>
    %167 = vector.broadcast %166 : vector<1x128xf32> to vector<8x128xf32>
    %168 = tpu.concatenate %167, %109, %148 in 0 : vector<8x128xf32>, vector<8x128xf32>, vector<8x128xf32> -> vector<24x128xf32>
    %c0_53 = arith.constant 0 : index
    %c0_54 = arith.constant 0 : index
    %169 = vector.load %arg6[%c0_53, %c0_54] : memref<24x128xf32, #tpu.memory_space<vmem>>, vector<24x128xf32>
    tpu.vector_store %arg6[%c0_53, %c0_54], %168 {strides = array<i32>} : memref<24x128xf32, #tpu.memory_space<vmem>>, vector<24x128xf32>,
    %c0_55 = arith.constant 0 : index
    %c0_56 = arith.constant 0 : index
    %170 = vector.load %arg5[%c0_55, %c0_56] : memref<6x128xf32, #tpu.memory_space<vmem>>, vector<6x128xf32>
    %171 = vector.extract_strided_slice %170 {offsets = [0, 0], sizes = [3, 128], strides = [1, 1]} : vector<6x128xf32> to vector<3x128xf32>
    %172 = vector.extract_strided_slice %170 {offsets = [3, 0], sizes = [3, 128], strides = [1, 1]} : vector<6x128xf32> to vector<3x128xf32>
    %173 = arith.subf %171, %172 : vector<3x128xf32>
    %174 = arith.mulf %173, %173 : vector<3x128xf32>
    %175 = vector.shape_cast %174 : vector<3x128xf32> to vector<1x3x128xf32>
    %cst_57 = arith.constant dense<0.000000e+00> : vector<1xf32>
    %176 = vector.multi_reduction <add>, %175, %cst_57 [1, 2] : vector<1x3x128xf32> to vector<1xf32>
    %177 = vector.shape_cast %176 : vector<1xf32> to vector<1x1x1xf32>
    %178 = vector.extract %177[0, 0, 0] : f32 from vector<1x1x1xf32>
    %cst_58 = arith.constant dense<0.000000e+00> : vector<128xf32>
    %179 = vector.multi_reduction <add>, %173, %cst_58 [0] : vector<3x128xf32> to vector<128xf32>
    %180 = arith.mulf %179, %179 : vector<128xf32>
    %181 = vector.shape_cast %180 : vector<128xf32> to vector<1x128xf32>
    %cst_59 = arith.constant dense<0.000000e+00> : vector<1xf32>
    %182 = vector.multi_reduction <add>, %181, %cst_59 [1] : vector<1x128xf32> to vector<1xf32>
    %183 = vector.shape_cast %182 : vector<1xf32> to vector<1x1xf32>
    %184 = vector.extract %183[0, 0] : f32 from vector<1x1xf32>
    %185 = arith.addf %178, %184 : f32
    %cst_60 = arith.constant 7.812500e-03 : f32
    %186 = arith.mulf %185, %cst_60 : f32
    %c0_61 = arith.constant 0 : index
    %187 = memref.load %arg8[%c0_61] : memref<1xf32, #tpu.memory_space<smem>>
    memref.store %186, %arg8[%c0_61] : memref<1xf32, #tpu.memory_space<smem>>
    return
  }
  func.func @transform_0(%arg0: i32) -> i32 {
    %c0_i32 = arith.constant 0 : i32
    %c0_i32_0 = arith.constant 0 : i32
    return %c0_i32 : i32
  }
  func.func @transform_1(%arg0: i32) -> (i32, i32) {
    %c0_i32 = arith.constant 0 : i32
    %c0_i32_0 = arith.constant 0 : i32
    %c0_i32_1 = arith.constant 0 : i32
    return %c0_i32, %c0_i32_0 : i32, i32
  }
  func.func @transform_2(%arg0: i32) -> (i32, i32) {
    %c0_i32 = arith.constant 0 : i32
    %c0_i32_0 = arith.constant 0 : i32
    %c0_i32_1 = arith.constant 0 : i32
    return %c0_i32, %c0_i32_0 : i32, i32
  }
  func.func @transform_3(%arg0: i32) -> (i32, i32, i32) {
    %c0_i32 = arith.constant 0 : i32
    %c0_i32_0 = arith.constant 0 : i32
    %c0_i32_1 = arith.constant 0 : i32
    %c0_i32_2 = arith.constant 0 : i32
    return %c0_i32, %c0_i32_0, %c0_i32_1 : i32, i32, i32
  }
  func.func @transform_4(%arg0: i32) -> (i32, i32) {
    %c0_i32 = arith.constant 0 : i32
    %c0_i32_0 = arith.constant 0 : i32
    %c0_i32_1 = arith.constant 0 : i32
    return %c0_i32, %c0_i32_0 : i32, i32
  }
  func.func @transform_5(%arg0: i32) -> (i32, i32) {
    %c0_i32 = arith.constant 0 : i32
    %c0_i32_0 = arith.constant 0 : i32
    %c0_i32_1 = arith.constant 0 : i32
    return %c0_i32, %c0_i32_0 : i32, i32
  }
  func.func @transform_6(%arg0: i32) -> (i32, i32) {
    %c0_i32 = arith.constant 0 : i32
    %c0_i32_0 = arith.constant 0 : i32
    %c0_i32_1 = arith.constant 0 : i32
    return %c0_i32, %c0_i32_0 : i32, i32
  }
  func.func @transform_7(%arg0: i32) -> i32 {
    %c0_i32 = arith.constant 0 : i32
    %c0_i32_0 = arith.constant 0 : i32
    return %c0_i32 : i32
  }
}

</mosaic_0001>

<llo_original>
// kernel: _fused_step.1
$region0: #{_fused_step.1}
  #allocation0 [shape = 'u32[]', space=smem, size = 0x4, offset = 0x4, fixed_abs, tag = 'smem constant byte address 0x4 - core index']
  #allocation1 [shape = 'u32[144,128]{1,0:T(1,128)}', space=vmem, size = 0x12000, scoped, tag = 'internal scratch']
  %s0 = inlined_call_operand.vmem [shape: f32[16], index: 0, kind: input, shape index: {}]
  %s1 = inlined_call_operand.hbm [shape: f32[24,128], index: 1, kind: input, shape index: {}, may-alias: {1,5}]
  %s2 = inlined_call_operand.vmem [shape: f32[8,128], index: 2, kind: input, shape index: {}]
  %s3 = inlined_call_operand.hbm [shape: f32[10,8,128], index: 3, kind: input, shape index: {}]
  %s4 = inlined_call_operand.vmem [shape: f32[6,128], index: 4, kind: input, shape index: {}]
  %s5 = inlined_call_operand.hbm [shape: f32[24,128], index: 5, kind: output, shape index: {0}, may-alias: {1,5}]
  %s6 = inlined_call_operand.hbm [shape: f32[8,128], index: 6, kind: output, shape index: {1}]
  %s7 = inlined_call_operand.hbm [shape: f32[1], index: 7, kind: output, shape index: {2}]
  %8 = xla_tuple %s5, %s6, %s7
  %s9 = sld [smem:[#allocation0]]
  $region58: #{_fused_step.1} parent=0
    _
  %s11 = ssub.s32 1, %s9
  %s12 = scalar_select 0, %s11, %s9
  $region1: #{_fused_step.1} parent=0
    #allocation2 [shape = 'u8[512]{0}', space=smem, size = 0x200, scoped, tag = 'input window, operand 0, single buffered']
    #allocation3 [shape = 's32[1]{0}', space=sflag, size = 0x4, scoped, tag = 'scoped memory for _fused_step.1']
    #allocation4 [shape = 's32[1]{0}', space=sflag, size = 0x4, scoped, tag = 'scoped memory for _fused_step.1']
    #allocation5 [shape = 's32[1]{0}', space=sflag, size = 0x4, scoped, tag = 'scoped memory for _fused_step.1']
    #allocation6 [shape = 's32[1]{0}', space=sflag, size = 0x4, scoped, tag = 'scoped memory for _fused_step.1']
    #allocation7 [shape = 'u8[12288]{0}', space=vmem, size = 0x3000, scoped, tag = 'input window, operand 1, single buffered']
    #allocation8 [shape = 'u8[40960]{0}', space=vmem, size = 0xa000, scoped, tag = 'input window, operand 3, single buffered']
    #allocation9 [shape = 's32[1]{0}', space=sflag, size = 0x4, scoped, tag = 'scoped memory for _fused_step.1']
    #allocation10 [shape = 'u8[12288]{0}', space=vmem, size = 0x3000, scoped, tag = 'output window, operand 0, single buffered']
    #allocation11 [shape = 'u8[4096]{0}', space=vmem, size = 0x1000, scoped, tag = 'output window, operand 1, single buffered']
    #allocation12 [shape = 's32[1]{0}', space=sflag, size = 0x4, scoped, tag = 'scoped memory for _fused_step.1']
    #allocation13 [shape = 'u8[512]{0}', space=smem, size = 0x200, scoped, tag = 'output window, operand 2, single buffered']
    %13 = vsyncpa [#allocation6], 0
    %14 = vsyncpa [#allocation3], 0
    %15 = vsyncpa [#allocation9], 0
    %16 = vsyncpa [#allocation4], 0
    %17 = vsyncpa [#allocation12], 0
    %18 = vsyncpa [#allocation5], 0
    // Predicated region
    $region2: #{_fused_step.1} parent=1 // pred_check
      _
    $region3: #{_fused_step.1} parent=1 // pred_check_branch
      %20 = sbr.rel (0) target = $region5
    $region4: #{_fused_step.1} parent=1 // pred_region
      %s22 = ssub.s32 16, 16
      %23 = vsyncadd [#allocation6], %s22
      %s25 = sshll.u32 %s0, 4
      %s26 = int_to_ptr.vmem [resolvable:$true] %s25
      %28 = dma.vmem_to_smem %s26, 16, [#allocation2], [#allocation6]
    $region5: #{_fused_step.1} parent=1 // pred_fallthru
      _
    // Predicated region
    $region6: #{_fused_step.1} parent=1 // pred_check
      _
    $region7: #{_fused_step.1} parent=1 // pred_check_branch
      %30 = sbr.rel (0) target = $region9
    $region8: #{_fused_step.1} parent=1 // pred_region
      %s32 = ssub.s32 384, 384
      %33 = vsyncadd [#allocation3], %s32
      %s34 = sshll.u32 [#allocation7], 4
      %s35 = int_to_ptr.vmem [resolvable:$true] %s34
      %40 = dma.hbm_to_vmem [thread:$0]  %s1, 384, %s35, [#allocation3], 128, 128, 8
    $region9: #{_fused_step.1} parent=1 // pred_fallthru
      _
    // Predicated region
    $region10: #{_fused_step.1} parent=1 // pred_check
      _
    $region11: #{_fused_step.1} parent=1 // pred_check_branch
      %42 = sbr.rel (0) target = $region13
    $region12: #{_fused_step.1} parent=1 // pred_region
      _
    $region13: #{_fused_step.1} parent=1 // pred_fallthru
      _
    // Predicated region
    $region14: #{_fused_step.1} parent=1 // pred_check
      _
    $region15: #{_fused_step.1} parent=1 // pred_check_branch
      %44 = sbr.rel (0) target = $region17
    $region16: #{_fused_step.1} parent=1 // pred_region
      %s46 = ssub.s32 1280, 1280
      %47 = vsyncadd [#allocation9], %s46
      %s48 = sshll.u32 [#allocation8], 4
      %s49 = int_to_ptr.vmem [resolvable:$true] %s48
      %54 = dma.hbm_to_vmem [thread:$0]  %s3, 1280, %s49, [#allocation9], 128, 128, 8
    $region17: #{_fused_step.1} parent=1 // pred_fallthru
      _
    // Predicated region
    $region18: #{_fused_step.1} parent=1 // pred_check
      _
    $region19: #{_fused_step.1} parent=1 // pred_check_branch
      %56 = sbr.rel (0) target = $region21
    $region20: #{_fused_step.1} parent=1 // pred_region
      _
    $region21: #{_fused_step.1} parent=1 // pred_fallthru
      _
    // Predicated region
    $region22: #{_fused_step.1} parent=1 // pred_check
      _
    $region23: #{_fused_step.1} parent=1 // pred_check_branch
      %58 = sbr.rel (0) target = $region25
    $region24: #{_fused_step.1} parent=1 // pred_region
      %59 = dma.done [#allocation6], 16
    $region25: #{_fused_step.1} parent=1 // pred_fallthru
      _
    // Predicated region
    $region26: #{_fused_step.1} parent=1 // pred_check
      _
    $region27: #{_fused_step.1} parent=1 // pred_check_branch
      %61 = sbr.rel (0) target = $region29
    $region28: #{_fused_step.1} parent=1 // pred_region
      %62 = dma.done [#allocation3], 384
    $region29: #{_fused_step.1} parent=1 // pred_fallthru
      _
    // Predicated region
    $region30: #{_fused_step.1} parent=1 // pred_check
      _
    $region31: #{_fused_step.1} parent=1 // pred_check_branch
      %64 = sbr.rel (0) target = $region33
    $region32: #{_fused_step.1} parent=1 // pred_region
      %65 = dma.done [#allocation9], 1280
    $region33: #{_fused_step.1} parent=1 // pred_fallthru
      _
    %66 = sfence
    %s67 = sld [smem:[#allocation2]]
    %s68 = sld [smem:[#allocation2 + $0x1]]
    %s69 = sld [smem:[#allocation2 + $0x2]]
    %s70 = sld [smem:[#allocation2 + $0x3]]
    %s71 = sld [smem:[#allocation2 + $0x4]]
    %s72 = sld [smem:[#allocation2 + $0x5]]
    %s73 = sld [smem:[#allocation2 + $0x6]]
    %s74 = sld [smem:[#allocation2 + $0x7]]
    %s75 = sld [smem:[#allocation2 + $0x8]]
    %s76 = sld [smem:[#allocation2 + $0x9]]
    %s77 = sld [smem:[#allocation2 + $0xa]]
    %s78 = sld [smem:[#allocation2 + $0xb]]
    %s79 = sld [smem:[#allocation2 + $0xc]]
    %s80 = sld [smem:[#allocation2 + $0xd]]
    %s81 = sld [smem:[#allocation2 + $0xe]]
    %s82 = sld [smem:[#allocation2 + $0xf]]
    %v83 = vld [vmem:[#allocation7] sm:$0xff]
    %v84 = vld [vmem:[#allocation7 + $0x8] sm:$0xff]
    %v85 = vld [vmem:[#allocation7 + $0x10] sm:$0xff]
    %v86 = vld [vmem:[%s2] sm:$0xff]
    %vm87 = vcmask 1040384
    %v88 = vsel %vm87, %v86, 0.0
    %89 = vadd.xlane.f32.xlu0 %v88
    %v90 = vpop.xlane.xlu0 %89
    %v91 = vrot.slane %v90, 4
    %v92 = vadd.f32 %v90, %v91
    %v93 = vrot.slane %v92, 2
    %v94 = vadd.f32 %v92, %v93
    %v95 = vrot.slane %v94, 1
    %v96 = vadd.f32 %v94, %v95
    %s97 = vtos %v96
    %v98 = vstv %s97
    %v99 = vrcp.pop %v98
    %s100 = vtos %v99
    %s101 = smul.f32 %s71, %s100
    %v103 = vrot.slane %v86, 1
    %v105 = vsel %vm87, %v103, 0.0
    %106 = vadd.xlane.f32.xlu0 %v105
    %v107 = vpop.xlane.xlu0 %106
    %v108 = vrot.slane %v107, 4
    %v109 = vadd.f32 %v107, %v108
    %v110 = vrot.slane %v109, 2
    %v111 = vadd.f32 %v109, %v110
    %v112 = vrot.slane %v111, 1
    %v113 = vadd.f32 %v111, %v112
    %s114 = vtos %v113
    %v115 = vstv %s114
    %v116 = vrcp.pop %v115
    %s117 = vtos %v116
    %s118 = smul.f32 %s72, %s117
    %v119 = vrot.slane %v86, 2
    %v121 = vsel %vm87, %v119, 0.0
    %122 = vadd.xlane.f32.xlu0 %v121
    %v123 = vpop.xlane.xlu0 %122
    %v124 = vrot.slane %v123, 4
    %v125 = vadd.f32 %v123, %v124
    %v126 = vrot.slane %v125, 2
    %v127 = vadd.f32 %v125, %v126
    %v128 = vrot.slane %v127, 1
    %v129 = vadd.f32 %v127, %v128
    %s130 = vtos %v129
    %v131 = vstv %s130
    %v132 = vrcp.pop %v131
    %s133 = vtos %v132
    %s134 = smul.f32 %s73, %s133
    %v135 = vstv %s101
    %v136 = vmul.f32 %v135, %v86
    %v137 = vstv %s118
    %v138 = vmul.f32 %v137, %v86
    %v140 = vrot.slane %v138, 1
    %v142 = vadd.f32 %v136, %v140
    %v143 = vstv %s134
    %v144 = vmul.f32 %v143, %v86
    %v146 = vrot.slane %v144, 2
    %v148 = vadd.f32 %v142, %v146
    %v149 = vstv %s70
    %v150 = vmul.f32 %v149, %v86
    %v151 = vadd.f32 %v150, 1.0
    %v152 = vrcp.pop %v151
    %v154 = vrot.slane %v152, 3
    %v156 = vmul.f32 %v148, %v154
    %v157 = vadd.f32 %v86, 1.0
    %v158 = vrcp.pop %v157
    %v159 = vmul.f32 %v158, 2.0
    %v160 = vsub.f32 %v156, %v83
    %v162 = vrot.slane %v160, 4
    %v164 = vmul.f32 %v159, %v162
    %v166 = vrot.slane %v164, 4
    %v168 = vadd.f32 %v83, %v166
    %v169 = vld [vmem:[#allocation8] sm:$0xff]
    %s170 = scalar_lea.vmem [#allocation8], 8
    %v171 = vld [vmem:[%s170] sm:$0xff]
    %s172 = scalar_lea.vmem [#allocation8], 16
    %v173 = vld [vmem:[%s172] sm:$0xff]
    %s174 = scalar_lea.vmem [#allocation8], 24
    %v175 = vld [vmem:[%s174] sm:$0xff]
    %s176 = scalar_lea.vmem [#allocation8], 32
    %v177 = vld [vmem:[%s176] sm:$0xff]
    %178 = vadd.xlane.f32.xlu0 %v169
    %v179 = vpop.xlane.xlu0 %178
    %v180 = vrcp.pop %v179
    %v181 = vstv %s75
    %v182 = vmul.f32 %v181, %v180
    %183 = vadd.xlane.f32.xlu0 %v171
    %v184 = vpop.xlane.xlu0 %183
    %v185 = vrcp.pop %v184
    %v186 = vstv %s76
    %v187 = vmul.f32 %v186, %v185
    %188 = vadd.xlane.f32.xlu0 %v173
    %v189 = vpop.xlane.xlu0 %188
    %v190 = vrcp.pop %v189
    %v191 = vstv %s77
    %v192 = vmul.f32 %v191, %v190
    %v193 = vmul.f32 %v182, %v169
    %v194 = vmul.f32 %v187, %v171
    %v195 = vadd.f32 %v193, %v194
    %v196 = vmul.f32 %v192, %v173
    %v197 = vadd.f32 %v195, %v196
    %v198 = vstv %s74
    %v199 = vmul.f32 %v198, %v175
    %v200 = vadd.f32 %v199, 1.0
    %v201 = vrcp.pop %v200
    %v202 = vmul.f32 %v197, %v201
    %v203 = vadd.f32 %v177, 1.0
    %v204 = vrcp.pop %v203
    %v205 = vmul.f32 %v204, 2.0
    %v206 = vsub.f32 %v202, %v84
    %v207 = vmul.f32 %v205, %v206
    %v208 = vadd.f32 %v84, %v207
    %s209 = scalar_lea.vmem [#allocation8], 40
    %v210 = vld [vmem:[%s209] sm:$0xff]
    %v211 = vstv %s78
    %v212 = vmul.f32 %v211, %v210
    %v213 = vadd.f32 %v85, %v212
    %s214 = scalar_lea.vmem [#allocation8], 48
    %v215 = vld [vmem:[%s214] sm:$0xff]
    %v216 = vstv %s79
    %v217 = vmul.f32 %v216, %v215
    %v218 = vadd.f32 %v213, %v217
    %s219 = scalar_lea.vmem [#allocation8], 56
    %v220 = vld [vmem:[%s219] sm:$0xff]
    %v221 = vstv %s80
    %v222 = vmul.f32 %v221, %v220
    %v223 = vadd.f32 %v218, %v222
    %s224 = scalar_lea.vmem [#allocation8], 64
    %v225 = vld [vmem:[%s224] sm:$0xff]
    %v226 = vstv %s81
    %v227 = vmul.f32 %v226, %v225
    %v228 = vadd.f32 %v223, %v227
    %s229 = scalar_lea.vmem [#allocation8], 72
    %v230 = vld [vmem:[%s229] sm:$0xff]
    %v231 = vstv %s82
    %v232 = vmul.f32 %v231, %v230
    %v233 = vadd.f32 %v228, %v232
    %234 = vadd.xlane.f32.xlu0 %v233
    %v235 = vpop.xlane.xlu0 %234
    %v236 = vrcp.pop 128.0
    %v237 = vmul.f32 %v235, %v236
    %v238 = vsub.f32 %v233, %v237
    %v239 = vmul.f32 %v238, %v238
    %240 = vadd.xlane.f32.xlu0 %v239
    %v241 = vpop.xlane.xlu0 %240
    %v242 = vmul.f32 %v241, 0.007874016
    %v243 = vrsqrt.pop %v242
    %v244 = vmul.f32 %v238, %v243
    %v245 = vstv %s67
    %v246 = vmul.f32 %v245, %v168
    %v247 = vstv %s68
    %v248 = vmul.f32 %v247, %v208
    %v249 = vlaneseq
    %v250 = vshrl.u32 %v249, 7
    %v251 = vsub.s32 0, %v250
    %v252 = vrot.slane %v246, %v251
    %v253 = vadd.f32 %v252, %v248
    %v254 = vstv %s69
    %v255 = vmul.f32 %v254, %v244
    %v256 = vadd.f32 %v253, %v255
    %v257 = vmul.f32 %v256, 1.442695
    %v258 = vpow.pop %v257
    %vm259 = vcmp.ne.f32.partialorder %v258, %v258
    %vm260 = vcmp.gt.f32.partialorder %v258, 1000.0
    %vm261 = vmor %vm259, %vm260
    %v262 = vsel %vm261, 1000.0, %v258
    %263 = vst [vmem:[#allocation11] sm:$0xff] %v262
    %v264 = vlaneseq
    %v265 = vshrl.u32 %v264, 7
    %v266 = vsub.s32 0, %v265
    %v267 = vrot.slane %v168, %v266
    %268 = vst [vmem:[#allocation10] sm:$0xff] %v267
    %269 = vst [vmem:[#allocation10 + $0x8] sm:$0xff] %v208
    %270 = vst [vmem:[#allocation10 + $0x10] sm:$0xff] %v244
    %v271 = vld [vmem:[%s4] sm:$0x3f]
    %v273 = vrot.slane %v271, 3
    %v275 = vsub.f32 %v271, %v273
    %v276 = vmul.f32 %v275, %v275
    %vm277 = vcmask 1042432
    %v278 = vsel %vm277, %v276, 0.0
    %279 = vadd.xlane.f32.xlu0 %v278
    %v280 = vpop.xlane.xlu0 %279
    %v281 = vrot.slane %v280, 4
    %v282 = vadd.f32 %v280, %v281
    %v283 = vrot.slane %v282, 2
    %v284 = vadd.f32 %v282, %v283
    %v285 = vrot.slane %v284, 1
    %v286 = vadd.f32 %v284, %v285
    %s287 = vtos %v286
    %v288 = vsel %vm277, %v275, 0.0
    %v289 = vrot.slane %v288, 4
    %v290 = vadd.f32 %v288, %v289
    %v291 = vrot.slane %v290, 2
    %v292 = vadd.f32 %v290, %v291
    %v293 = vrot.slane %v292, 1
    %v294 = vadd.f32 %v292, %v293
    %v295 = vmul.f32 %v294, %v294
    %296 = vadd.xlane.f32.xlu0 %v295
    %v297 = vpop.xlane.xlu0 %296
    %s298 = vtos %v297
    %s299 = sadd.f32 %s287, %s298
    %s300 = smul.f32 %s299, 0.0078125
    %s301 = scalar_lea.smem [#allocation13], 0
    %302 = sst [smem:[%s301]] %s300
    // Predicated region
    $region34: #{_fused_step.1} parent=1 // pred_check
      _
    $region35: #{_fused_step.1} parent=1 // pred_check_branch
      %304 = sbr.rel (0) target = $region37
    $region36: #{_fused_step.1} parent=1 // pred_region
      %s306 = ssub.s32 384, 384
      %307 = vsyncadd [#allocation4], %s306
      %s308 = sshll.u32 [#allocation10], 4
      %s309 = int_to_ptr.vmem [resolvable:$true] %s308
      %314 = dma.vmem_to_hbm [thread:$0]  %s309, 384, %s5, [#allocation4], 128, 128, 8
    $region37: #{_fused_step.1} parent=1 // pred_fallthru
      _
    // Predicated region
    $region38: #{_fused_step.1} parent=1 // pred_check
      _
    $region39: #{_fused_step.1} parent=1 // pred_check_branch
      %316 = sbr.rel (0) target = $region41
    $region40: #{_fused_step.1} parent=1 // pred_region
      %s318 = ssub.s32 128, 128
      %319 = vsyncadd [#allocation12], %s318
      %s321 = sshll.u32 [#allocation11], 4
      %s322 = int_to_ptr.vmem [resolvable:$true] %s321
      %324 = dma.vmem_to_hbm [thread:$0]  %s322, 128, %s6, [#allocation12]
    $region41: #{_fused_step.1} parent=1 // pred_fallthru
      _
    // Predicated region
    $region42: #{_fused_step.1} parent=1 // pred_check
      _
    $region43: #{_fused_step.1} parent=1 // pred_check_branch
      %326 = sbr.rel (0) target = $region45
    $region44: #{_fused_step.1} parent=1 // pred_region
      %s328 = ssub.s32 16, 16
      %329 = vsyncadd [#allocation5], %s328
      %332 = dma.smem_to_hbm [#allocation13], 16, %s7, [#allocation5]
    $region45: #{_fused_step.1} parent=1 // pred_fallthru
      _
    // Predicated region
    $region46: #{_fused_step.1} parent=1 // pred_check
      _
    $region47: #{_fused_step.1} parent=1 // pred_check_branch
      %334 = sbr.rel (0) target = $region49
    $region48: #{_fused_step.1} parent=1 // pred_region
      %335 = dma.done [#allocation4], 384
    $region49: #{_fused_step.1} parent=1 // pred_fallthru
      _
    // Predicated region
    $region50: #{_fused_step.1} parent=1 // pred_check
      _
    $region51: #{_fused_step.1} parent=1 // pred_check_branch
      %337 = sbr.rel (0) target = $region53
    $region52: #{_fused_step.1} parent=1 // pred_region
      %338 = dma.done [#allocation12], 128
    $region53: #{_fused_step.1} parent=1 // pred_fallthru
      _
    // Predicated region
    $region54: #{_fused_step.1} parent=1 // pred_check
      _
    $region55: #{_fused_step.1} parent=1 // pred_check_branch
      %340 = sbr.rel (0) target = $region57
    $region56: #{_fused_step.1} parent=1 // pred_region
      %341 = dma.done [#allocation5], 16
    $region57: #{_fused_step.1} parent=1 // pred_fallthru
      _
    %342 = sfence
    %343 = vsyncpa [#allocation3], 1
    %344 = vsyncpa [#allocation9], 1
    %345 = vsyncpa [#allocation4], 1
    %346 = vsyncpa [#allocation12], 1
    %347 = vsyncpa [#allocation5], 1
    %348 = vsyncpa [#allocation6], 1

</llo_original>
